<compile_context>
chip_gen: v7x
topology: tpu7x:2x2x1
jax: 0.10.0
libtpu: 0.0.40
codegen_flags: <defaults>
</compile_context>

<pallas_src>
from functools import partial

import jax
import jax.numpy as jnp
from jax.experimental import pallas as pl
from jax.experimental.pallas import tpu as pltpu


def _patch_embed_kernel(x_ref, w_ref, b_ref, o_ref):
    # x_ref: (TB, K, S) bf16 raw-pixel patch columns (K = C*P*P, S = Hp*Wp)
    # w_ref: (N, K)     bf16 conv weights, unscaled (resident across the grid)
    # b_ref: (N, 1)     f32  normalization-folded bias: bias - W.sum(K)
    # o_ref: (TB, N, S) f32  conv output, already in NCHW-friendly order
    w = w_ref[...]
    bias = b_ref[...]
    inv = jnp.float32(1.0 / 127.5)
    for b in range(x_ref.shape[0]):             # TB is small & static -> unrolled
        acc = jnp.dot(w, x_ref[b], preferred_element_type=jnp.float32)
        o_ref[b] = acc * inv + bias             # fold x/127.5 - 1 into the epilogue


def _pick_batch_tile(B, bytes_per_image, target_bytes=4 * 1024 * 1024):
    """Largest divisor of B that (a) keeps the per-step block ~target_bytes and
    (b) leaves >= 2 grid steps when B >= 2 (both v7x TensorCores get work)."""
    cap = max(1, min(B, target_bytes // max(bytes_per_image, 1)))
    if B >= 2:
        cap = min(cap, B // 2)
    tb = 1
    for d in range(1, cap + 1):
        if B % d == 0:
            tb = d
    return tb


@partial(jax.jit, static_argnums=(3, 4))
def patch_encoder_forward(observations, conv_w, conv_b, patch_size,
                          allow_input_fusion=True):
    """observations: (B, C, H, W) raw pixels in [0, 255] (NCHW, like PyTorch).
    conv_w: (num_features, C, P, P) PyTorch Conv2d weight layout (OIHW).
    conv_b: (num_features,)
    Returns: (B, num_features, H//P, W//P) float32 (NCHW, like PyTorch Conv2d)."""
    B, C, H, W = observations.shape
    P = patch_size
    N = conv_w.shape[0]
    assert H % P == 0 and W % P == 0, "image size must be divisible by patch_size"
    Hp, Wp = H // P, W // P
    S = Hp * Wp
    K = C * P * P

    # ---- Parameters: unscaled bf16 weights + f32 normalization-folded bias ----
    #   dot(x/127.5 - 1, W) + b  ==  dot(x, W) * (1/127.5) + (b - W.sum(K))
    w_mat = conv_w.reshape(N, K)                                   # (c, kh, kw) order
    w_bf16 = w_mat.astype(jnp.bfloat16)                            # (N, K)
    b_fold = (conv_b.astype(jnp.float32)
              - jnp.sum(w_mat.astype(jnp.float32), axis=1)).reshape(N, 1)

    # ---- Unfold image into (B, K, S) patch columns, cast to bf16 ----
    # obs (B,C,H,W) -> (B,C,Hp,P,Wp,P) -> (B, C,P,P, Hp,Wp) -> (B, K, S).
    # With allow_input_fusion XLA may fuse this cast+transpose into the kernel's
    # input DMA; otherwise it is one explicit bf16 HBM pass.
    # TODO(synk): if observations arrive as uint8 pixels, keep them 8-bit here and
    # cast in-kernel to halve the unfold/input traffic further.
    x = observations.astype(jnp.bfloat16).reshape(B, C, Hp, P, Wp, P)
    x_cols = jnp.transpose(x, (0, 1, 3, 5, 2, 4)).reshape(B, K, S)

    TB = _pick_batch_tile(B, K * S * 2 + N * S * 4)

    cost = pl.CostEstimate(
        flops=2 * B * N * K * S,
        transcendentals=0,
        bytes_accessed=B * K * S * 2 + N * K * 2 + N * 4 + B * N * S * 4,
    )

    out = pl.pallas_call(
        _patch_embed_kernel,
        out_shape=jax.ShapeDtypeStruct((B, N, S), jnp.float32),
        grid=(B // TB,),
        in_specs=[
            pl.BlockSpec((TB, K, S), lambda i: (i, 0, 0)),   # patch cols: tiled over batch
            pl.BlockSpec((N, K), lambda i: (0, 0)),          # weights: resident
            pl.BlockSpec((N, 1), lambda i: (0, 0)),          # folded bias: resident
        ],
        out_specs=pl.BlockSpec((TB, N, S), lambda i: (i, 0, 0)),
        compiler_params=pltpu.CompilerParams(
            dimension_semantics=("parallel",),
            allow_input_fusion=[True, False, False] if allow_input_fusion else None,
        ),
        cost_estimate=cost,
    )(x_cols, w_bf16, b_fold)

    # Free reshape: (B, N, S) -> (B, N, Hp, Wp), NCHW like PyTorch. No transpose pass.
    return out.reshape(B, N, Hp, Wp)


if __name__ == "__main__":
    # Small shapes consistent with the module: Conv2d(3, num_features, P, stride=P).
    B, C, H, W = 2, 3, 16, 16
    PATCH_SIZE = 8
    NUM_FEATURES = 32

    key = jax.random.PRNGKey(0)
    k_img, k_w, k_b = jax.random.split(key, 3)

    # Raw pixel-like inputs in [0, 255] (NCHW, float32).
    observations = jax.random.uniform(
        k_img, (B, C, H, W), minval=0.0, maxval=255.0, dtype=jnp.float32
    )
    conv_w = 0.02 * jax.random.normal(
        k_w, (NUM_FEATURES, C, PATCH_SIZE, PATCH_SIZE), dtype=jnp.float32
    )
    conv_b = 0.01 * jax.random.normal(k_b, (NUM_FEATURES,), dtype=jnp.float32)

    # Reference: plain f32 conv with PyTorch semantics (NCHW / OIHW).
    x_norm = observations / 127.5 - 1.0
    ref = jax.lax.conv_general_dilated(
        x_norm,
        conv_w,
        window_strides=(PATCH_SIZE, PATCH_SIZE),
        padding="VALID",
        dimension_numbers=("NCHW", "OIHW", "NCHW"),
    ) + conv_b.reshape(1, NUM_FEATURES, 1, 1)

    def _run(fuse):
        o = patch_encoder_forward(observations, conv_w, conv_b, PATCH_SIZE, fuse)
        return jax.block_until_ready(o)

    try:
        out = _run(True)
        if not jnp.allclose(out, ref, atol=2e-2, rtol=2e-2):
            raise RuntimeError("input-fusion path mismatch")
    except Exception:
        # Fall back to the explicit-unfold build if the fused-input path is rejected.
        out = _run(False)

    assert out.shape == (B, NUM_FEATURES, H // PATCH_SIZE, W // PATCH_SIZE)
    # bf16 activations/weights (f32 accumulation) -> loosened tolerance.
    assert jnp.allclose(out, ref, atol=2e-2, rtol=2e-2), (
        float(jnp.max(jnp.abs(out - ref)))
    )

    print("KERNEL_OK")
</pallas_src>

<mosaic_0001>
module attributes {stable_mosaic.version = 11 : i64} {
  func.func @_patch_embed_kernel(%arg0: i32, %arg1: memref<1x192x4xbf16, #tpu.memory_space<vmem>>, %arg2: memref<32x192xbf16, #tpu.memory_space<vmem>>, %arg3: memref<32x1xf32, #tpu.memory_space<vmem>>, %arg4: memref<1x32x4xf32, #tpu.memory_space<vmem>>) attributes {dimension_semantics = [#tpu.dimension_semantics<parallel>], iteration_bounds = array<i64: 2>, scalar_prefetch = 0 : i64, scratch_operands = 0 : i64, tpu.core_type = #tpu.core_type<tc>, window_params = [{transform_indices = @transform_0, window_bounds = array<i64: 1, 192, 4>}, {pipeline_mode = #tpu.pipeline_mode<synchronous>, transform_indices = @transform_1, window_bounds = array<i64: 32, 192>}, {pipeline_mode = #tpu.pipeline_mode<synchronous>, transform_indices = @transform_2, window_bounds = array<i64: 32, 1>}, {transform_indices = @transform_3, window_bounds = array<i64: 1, 32, 4>}]} {
    %c0 = arith.constant 0 : index
    %c0_0 = arith.constant 0 : index
    %0 = vector.load %arg2[%c0, %c0_0] : memref<32x192xbf16, #tpu.memory_space<vmem>>, vector<32x192xbf16>
    %c0_1 = arith.constant 0 : index
    %c0_2 = arith.constant 0 : index
    %1 = vector.load %arg3[%c0_1, %c0_2] : memref<32x1xf32, #tpu.memory_space<vmem>>, vector<32x1xf32>
    %c0_3 = arith.constant 0 : index
    %c0_4 = arith.constant 0 : index
    %c0_5 = arith.constant 0 : index
    %2 = vector.load %arg1[%c0_3, %c0_4, %c0_5] : memref<1x192x4xbf16, #tpu.memory_space<vmem>>, vector<1x192x4xbf16>
    %3 = vector.shape_cast %2 : vector<1x192x4xbf16> to vector<192x4xbf16>
    %cst = arith.constant dense<0.000000e+00> : vector<32x4xf32>
    %4 = tpu.matmul %0, %3, %cst {dimension_numbers = #tpu.dot_dimension_numbers<[1], [0], [0], [1], [0, 0, 1, 1], [], []>} : vector<32x192xbf16>, vector<192x4xbf16>, vector<32x4xf32> -> vector<32x4xf32>
    %cst_6 = arith.constant 0.00784313772 : f32
    %5 = vector.broadcast %cst_6 : f32 to vector<32x4xf32>
    %6 = arith.mulf %4, %5 : vector<32x4xf32>
    %7 = vector.broadcast %1 : vector<32x1xf32> to vector<32x4xf32>
    %8 = arith.addf %6, %7 : vector<32x4xf32>
    %c0_7 = arith.constant 0 : index
    %c0_8 = arith.constant 0 : index
    %c0_9 = arith.constant 0 : index
    %9 = vector.load %arg4[%c0_7, %c0_8, %c0_9] : memref<1x32x4xf32, #tpu.memory_space<vmem>>, vector<1x32x4xf32>
    %10 = vector.shape_cast %9 : vector<1x32x4xf32> to vector<32x4xf32>
    %11 = vector.shape_cast %8 : vector<32x4xf32> to vector<1x32x4xf32>
    tpu.vector_store %arg4[%c0_7, %c0_8, %c0_9], %11 {strides = array<i32>} : memref<1x32x4xf32, #tpu.memory_space<vmem>>, vector<1x32x4xf32>,
    return
  }
  func.func @transform_0(%arg0: i32) -> (i32, i32, i32) {
    %c0_i32 = arith.constant 0 : i32
    %c0_i32_0 = arith.constant 0 : i32
    %c0_i32_1 = arith.constant 0 : i32
    return %arg0, %c0_i32, %c0_i32_0 : i32, i32, i32
  }
  func.func @transform_1(%arg0: i32) -> (i32, i32) {
    %c0_i32 = arith.constant 0 : i32
    %c0_i32_0 = arith.constant 0 : i32
    %c0_i32_1 = arith.constant 0 : i32
    return %c0_i32, %c0_i32_0 : i32, i32
  }
  func.func @transform_2(%arg0: i32) -> (i32, i32) {
    %c0_i32 = arith.constant 0 : i32
    %c0_i32_0 = arith.constant 0 : i32
    %c0_i32_1 = arith.constant 0 : i32
    return %c0_i32, %c0_i32_0 : i32, i32
  }
  func.func @transform_3(%arg0: i32) -> (i32, i32, i32) {
    %c0_i32 = arith.constant 0 : i32
    %c0_i32_0 = arith.constant 0 : i32
    %c0_i32_1 = arith.constant 0 : i32
    return %arg0, %c0_i32, %c0_i32_0 : i32, i32, i32
  }
}

module attributes {stable_mosaic.version = 11 : i64} {
  func.func @_patch_embed_kernel(%arg0: i32, %arg1: memref<1x192x4xbf16, #tpu.memory_space<vmem>>, %arg2: memref<32x192xbf16, #tpu.memory_space<vmem>>, %arg3: memref<32x1xf32, #tpu.memory_space<vmem>>, %arg4: memref<1x32x4xf32, #tpu.memory_space<vmem>>) attributes {dimension_semantics = [#tpu.dimension_semantics<parallel>], iteration_bounds = array<i64: 2>, scalar_prefetch = 0 : i64, scratch_operands = 0 : i64, tpu.core_type = #tpu.core_type<tc>, window_params = [{transform_indices = @transform_0, window_bounds = array<i64: 1, 192, 4>}, {pipeline_mode = #tpu.pipeline_mode<synchronous>, transform_indices = @transform_1, window_bounds = array<i64: 32, 192>}, {pipeline_mode = #tpu.pipeline_mode<synchronous>, transform_indices = @transform_2, window_bounds = array<i64: 32, 1>}, {transform_indices = @transform_3, window_bounds = array<i64: 1, 32, 4>}]} {
    %c0 = arith.constant 0 : index
    %c0_0 = arith.constant 0 : index
    %0 = vector.load %arg2[%c0, %c0_0] : memref<32x192xbf16, #tpu.memory_space<vmem>>, vector<32x192xbf16>
    %c0_1 = arith.constant 0 : index
    %c0_2 = arith.constant 0 : index
    %1 = vector.load %arg3[%c0_1, %c0_2] : memref<32x1xf32, #tpu.memory_space<vmem>>, vector<32x1xf32>
    %c0_3 = arith.constant 0 : index
    %c0_4 = arith.constant 0 : index
    %c0_5 = arith.constant 0 : index
    %2 = vector.load %arg1[%c0_3, %c0_4, %c0_5] : memref<1x192x4xbf16, #tpu.memory_space<vmem>>, vector<1x192x4xbf16>
    %3 = vector.shape_cast %2 : vector<1x192x4xbf16> to vector<192x4xbf16>
    %cst = arith.constant dense<0.000000e+00> : vector<32x4xf32>
    %4 = tpu.matmul %0, %3, %cst {dimension_numbers = #tpu.dot_dimension_numbers<[1], [0], [0], [1], [0, 0, 1, 1], [], []>} : vector<32x192xbf16>, vector<192x4xbf16>, vector<32x4xf32> -> vector<32x4xf32>
    %cst_6 = arith.constant 0.00784313772 : f32
    %5 = vector.broadcast %cst_6 : f32 to vector<32x4xf32>
    %6 = arith.mulf %4, %5 : vector<32x4xf32>
    %7 = vector.broadcast %1 : vector<32x1xf32> to vector<32x4xf32>
    %8 = arith.addf %6, %7 : vector<32x4xf32>
    %c0_7 = arith.constant 0 : index
    %c0_8 = arith.constant 0 : index
    %c0_9 = arith.constant 0 : index
    %9 = vector.load %arg4[%c0_7, %c0_8, %c0_9] : memref<1x32x4xf32, #tpu.memory_space<vmem>>, vector<1x32x4xf32>
    %10 = vector.shape_cast %9 : vector<1x32x4xf32> to vector<32x4xf32>
    %11 = vector.shape_cast %8 : vector<32x4xf32> to vector<1x32x4xf32>
    tpu.vector_store %arg4[%c0_7, %c0_8, %c0_9], %11 {strides = array<i32>} : memref<1x32x4xf32, #tpu.memory_space<vmem>>, vector<1x32x4xf32>,
    return
  }
  func.func @transform_0(%arg0: i32) -> (i32, i32, i32) {
    %c0_i32 = arith.constant 0 : i32
    %c0_i32_0 = arith.constant 0 : i32
    %c0_i32_1 = arith.constant 0 : i32
    return %arg0, %c0_i32, %c0_i32_0 : i32, i32, i32
  }
  func.func @transform_1(%arg0: i32) -> (i32, i32) {
    %c0_i32 = arith.constant 0 : i32
    %c0_i32_0 = arith.constant 0 : i32
    %c0_i32_1 = arith.constant 0 : i32
    return %c0_i32, %c0_i32_0 : i32, i32
  }
  func.func @transform_2(%arg0: i32) -> (i32, i32) {
    %c0_i32 = arith.constant 0 : i32
    %c0_i32_0 = arith.constant 0 : i32
    %c0_i32_1 = arith.constant 0 : i32
    return %c0_i32, %c0_i32_0 : i32, i32
  }
  func.func @transform_3(%arg0: i32) -> (i32, i32, i32) {
    %c0_i32 = arith.constant 0 : i32
    %c0_i32_0 = arith.constant 0 : i32
    %c0_i32_1 = arith.constant 0 : i32
    return %arg0, %c0_i32, %c0_i32_0 : i32, i32, i32
  }
}

</mosaic_0001>

<llo_original>
// kernel: patch_encoder_forward.1
$region0: #{patch_encoder_forward.1}
  #allocation0 [shape = 'u32[]', space=smem, size = 0x4, offset = 0x4, fixed_abs, tag = 'smem constant byte address 0x4 - core index']
  #allocation1 [shape = 'u32[144,128]{1,0:T(1,128)}', space=vmem, size = 0x12000, scoped, tag = 'internal scratch']
  %s0 = inlined_call_operand.vmem [shape: bf16[2,192,4], index: 0, kind: input, shape index: {}]
  %s1 = inlined_call_operand.vmem [shape: bf16[32,192], index: 1, kind: input, shape index: {}]
  %s2 = inlined_call_operand.vmem [shape: f32[32,1], index: 2, kind: input, shape index: {}]
  %s3 = inlined_call_operand.vmem [shape: f32[2,32,4], index: 3, kind: output, shape index: {}]
  %s4 = sld [smem:[#allocation0]]
  $region45: #{patch_encoder_forward.1} parent=0
    _
  %s6 = ssub.s32 1, %s4
  %s7 = scalar_select 0, %s6, %s4
  loop: start=0, step=1, limit=4
  $region2: #{patch_encoder_forward.1} parent=0 // loop_pre_header
    _
  $region3: #{patch_encoder_forward.1} parent=0 // loop_header
    %s9 = sphi 0, %s13
    %p10 = scmp.ge.s32.totalorder %s9, 4
    %s19 = sphi 0, %s21
    %s22 = sphi 0, %s19
    %s23 = sphi 0, %s22
    %s39 = sphi 0, %s23
    %s43 = sphi 0, %s43
    %s45 = sphi 0, %s43
    %s46 = sphi 0, %s45
    %s60 = sphi 0, %s46
    %s64 = sphi 0, %s64
    %s66 = sphi 0, %s64
    %s67 = sphi 0, %s66
    %s81 = sphi 0, %s67
    %s87 = sphi 0, %s89
    %s90 = sphi 0, %s87
    %s91 = sphi 0, %s90
    %s107 = sphi 0, %s91
  $region4: #{patch_encoder_forward.1} parent=0 // loop_header_branch
    %12 = sbr.rel (%p10) target = $region8
  $region5: #{patch_encoder_forward.1} parent=0 // loop_body
    %s14 = ssub.s32 %s9, 1
    %s15 = ssub.s32 %s9, 2
    %s16 = sadd.s32 %s9, 1
    %s17 = ssub.s32 %s9, %s16
    %p18 = scmp.eq.s32.totalorder %s17, 0
    %s20 = sadd.s32 %s19, 1
    %s21 = scalar_select %p18, %s19, %s20
    %p24 = pneg %p18
    %p25 = scmp.eq.s32.totalorder %s9, 1
    %p26 = por %p24, %p25
    %p27 = scmp.ne.s32.totalorder %s19, %s22
    %p28 = scmp.eq.s32.totalorder %s9, 0
    %p29 = por %p27, %p28
    %p30 = scmp.ne.s32.totalorder %s19, %s22
    %p31 = scmp.eq.s32.totalorder %s14, 1
    %p32 = por %p30, %p31
    %p33 = scmp.ne.s32.totalorder %s22, %s23
    %p34 = scmp.eq.s32.totalorder %s14, 0
    %p35 = por %p33, %p34
    %p36 = scmp.ne.s32.totalorder %s22, %s23
    %p37 = scmp.eq.s32.totalorder %s15, 1
    %p38 = por %p36, %p37
    %p40 = scmp.ne.s32.totalorder %s23, %s39
    %p41 = scmp.eq.s32.totalorder %s15, 0
    %p42 = por %p40, %p41
    %s44 = sadd.s32 %s43, 1
    %p47 = scmp.eq.s32.totalorder %s9, 1
    %p48 = scmp.ne.s32.totalorder %s43, %s45
    %p49 = scmp.eq.s32.totalorder %s9, 0
    %p50 = por %p48, %p49
    %p51 = scmp.ne.s32.totalorder %s43, %s45
    %p52 = scmp.eq.s32.totalorder %s14, 1
    %p53 = por %p51, %p52
    %p54 = scmp.ne.s32.totalorder %s45, %s46
    %p55 = scmp.eq.s32.totalorder %s14, 0
    %p56 = por %p54, %p55
    %p57 = scmp.ne.s32.totalorder %s45, %s46
    %p58 = scmp.eq.s32.totalorder %s15, 1
    %p59 = por %p57, %p58
    %p61 = scmp.ne.s32.totalorder %s46, %s60
    %p62 = scmp.eq.s32.totalorder %s15, 0
    %p63 = por %p61, %p62
    %s65 = sadd.s32 %s64, 1
    %p68 = scmp.eq.s32.totalorder %s9, 1
    %p69 = scmp.ne.s32.totalorder %s64, %s66
    %p70 = scmp.eq.s32.totalorder %s9, 0
    %p71 = por %p69, %p70
    %p72 = scmp.ne.s32.totalorder %s64, %s66
    %p73 = scmp.eq.s32.totalorder %s14, 1
    %p74 = por %p72, %p73
    %p75 = scmp.ne.s32.totalorder %s66, %s67
    %p76 = scmp.eq.s32.totalorder %s14, 0
    %p77 = por %p75, %p76
    %p78 = scmp.ne.s32.totalorder %s66, %s67
    %p79 = scmp.eq.s32.totalorder %s15, 1
    %p80 = por %p78, %p79
    %p82 = scmp.ne.s32.totalorder %s67, %s81
    %p83 = scmp.eq.s32.totalorder %s15, 0
    %p84 = por %p82, %p83
    %s85 = ssub.s32 %s9, %s16
    %p86 = scmp.eq.s32.totalorder %s85, 0
    %s88 = sadd.s32 %s87, 1
    %s89 = scalar_select %p86, %s87, %s88
    %p92 = pneg %p86
    %p93 = scmp.eq.s32.totalorder %s9, 1
    %p94 = por %p92, %p93
    %p95 = scmp.ne.s32.totalorder %s87, %s90
    %p96 = scmp.eq.s32.totalorder %s9, 0
    %p97 = por %p95, %p96
    %p98 = scmp.ne.s32.totalorder %s87, %s90
    %p99 = scmp.eq.s32.totalorder %s14, 1
    %p100 = por %p98, %p99
    %p101 = scmp.ne.s32.totalorder %s90, %s91
    %p102 = scmp.eq.s32.totalorder %s14, 0
    %p103 = por %p101, %p102
    %p104 = scmp.ne.s32.totalorder %s90, %s91
    %p105 = scmp.eq.s32.totalorder %s15, 1
    %p106 = por %p104, %p105
    %p108 = scmp.ne.s32.totalorder %s91, %s107
    %p109 = scmp.eq.s32.totalorder %s15, 0
    %p110 = por %p108, %p109
    %p111 = scmp.le.s32.totalorder 1, %s9
    %p112 = scmp.lt.s32.totalorder %s9, 3
    %p113 = pnand %p111, %p112
    %p114 = pneg %p113
    // Predicated region
    $region9: #{patch_encoder_forward.1} parent=5 // pred_check
      _
    $region10: #{patch_encoder_forward.1} parent=5 // pred_check_branch
      %116 = sbr.rel (%p113) target = $region12
    $region11: #{patch_encoder_forward.1} parent=5 // pred_region
      %s117 = ssub.s32 %s9, 1
      // Predicated region
      $region13: #{patch_encoder_forward.1} parent=11 // pred_check
        %p118 = pneg %p56
      $region14: #{patch_encoder_forward.1} parent=11 // pred_check_branch
        %120 = sbr.rel (%p118) target = $region16
      $region15: #{patch_encoder_forward.1} parent=11 // pred_region
        _
      $region16: #{patch_encoder_forward.1} parent=11 // pred_fallthru
        _
      // Predicated region
      $region17: #{patch_encoder_forward.1} parent=11 // pred_check
        %p121 = pneg %p77
      $region18: #{patch_encoder_forward.1} parent=11 // pred_check_branch
        %123 = sbr.rel (%p121) target = $region20
      $region19: #{patch_encoder_forward.1} parent=11 // pred_region
        _
      $region20: #{patch_encoder_forward.1} parent=11 // pred_fallthru
        _
    $region12: #{patch_encoder_forward.1} parent=5 // pred_fallthru
      _
    %p124 = scmp.lt.s32.totalorder %s9, 2
    // Predicated region
    $region21: #{patch_encoder_forward.1} parent=5 // pred_check
      %p125 = pneg %p124
    $region22: #{patch_encoder_forward.1} parent=5 // pred_check_branch
      %127 = sbr.rel (%p125) target = $region24
    $region23: #{patch_encoder_forward.1} parent=5 // pred_region
      // Predicated region
      $region25: #{patch_encoder_forward.1} parent=23 // pred_check
        %p128 = pneg %p29
      $region26: #{patch_encoder_forward.1} parent=23 // pred_check_branch
        %130 = sbr.rel (%p128) target = $region28
      $region27: #{patch_encoder_forward.1} parent=23 // pred_region
        %p131 = scmp.lt.s32.totalorder %s9, 1
        %s132 = scalar_select %p131, %s9, 1
        %s133 = smul.addr %s132, 24
        %s134 = smul.addr %s133, 4
        %s135 = scalar_lea.vmem %s0, %s134
      $region28: #{patch_encoder_forward.1} parent=23 // pred_fallthru
        _
    $region24: #{patch_encoder_forward.1} parent=5 // pred_fallthru
      _
    %p136 = scmp.le.s32.totalorder 1, %s9
    %p137 = scmp.lt.s32.totalorder %s9, 3
    %p138 = pnand %p136, %p137
    %p139 = pneg %p138
    // Predicated region
    $region29: #{patch_encoder_forward.1} parent=5 // pred_check
      _
    $region30: #{patch_encoder_forward.1} parent=5 // pred_check_branch
      %141 = sbr.rel (%p138) target = $region32
    $region31: #{patch_encoder_forward.1} parent=5 // pred_region
      %s142 = ssub.s32 %s9, 1
      %p143 = scmp.lt.s32.totalorder %s14, 1
      %s144 = scalar_select %p143, %s14, 1
      %s145 = smul.addr %s144, 24
      %s146 = smul.addr %s145, 4
      %s147 = scalar_lea.vmem %s0, %s146
      %p148 = pneg %p35
      %p149 = pneg %p32
      %p150 = pneg %p56
      %p151 = pneg %p53
      %p152 = pneg %p77
      %p153 = pneg %p74
      %p154 = pneg %p103
      %p155 = pneg %p100
      %p156 = scmp.lt.s32.totalorder %s14, 1
      %s157 = scalar_select %p156, %s14, 1
      %s158 = smul.addr %s157, 4
      %s159 = smul.addr %s158, 8
      %s160 = scalar_lea.vmem %s3, %s159
      %p161 = scmp.lt.s32.totalorder %s14, 1
      %s162 = scalar_select %p161, %s14, 1
      %s163 = smul.addr %s162, 24
      %s164 = smul.addr %s163, 4
      %s165 = scalar_lea.vmem %s0, %s164
      %p166 = scmp.lt.s32.totalorder %s14, 1
      %s167 = scalar_select %p166, %s14, 1
      %s168 = smul.addr %s167, 4
      %s169 = smul.addr %s168, 8
      %s170 = scalar_lea.vmem %s3, %s169
      %v172 = vld [vmem:[%s1] sm:$0xff]
      %v173 = vld [vmem:[%s1 + $0x8] sm:$0xff]
      %v174 = vld [vmem:[%s1 + $0x10] sm:$0xff]
      %v175 = vld [vmem:[%s1 + $0x18] sm:$0xff]
      %v176 = vld [vmem:[%s2] sm:$0xff]
      %v177 = vld [vmem:[%s2 + $0x8] sm:$0xff]
      %v178 = vld [vmem:[%s2 + $0x10] sm:$0xff]
      %v179 = vld [vmem:[%s2 + $0x18] sm:$0xff]
      %v180 = vld [vmem:[%s165] sm:$0xf]
      %v181 = vld [vmem:[%s165 + $0x4] sm:$0xf]
      %v182 = vld [vmem:[%s165 + $0x8] sm:$0xf]
      %v183 = vld [vmem:[%s165 + $0xc] sm:$0xf]
      %v184 = vld [vmem:[%s165 + $0x10] sm:$0xf]
      %v185 = vld [vmem:[%s165 + $0x14] sm:$0xf]
      %v186 = vld [vmem:[%s165 + $0x18] sm:$0xf]
      %v187 = vld [vmem:[%s165 + $0x1c] sm:$0xf]
      %v188 = vld [vmem:[%s165 + $0x20] sm:$0xf]
      %v189 = vld [vmem:[%s165 + $0x24] sm:$0xf]
      %v190 = vld [vmem:[%s165 + $0x28] sm:$0xf]
      %v191 = vld [vmem:[%s165 + $0x2c] sm:$0xf]
      %v192 = vld [vmem:[%s165 + $0x30] sm:$0xf]
      %v193 = vld [vmem:[%s165 + $0x34] sm:$0xf]
      %v194 = vld [vmem:[%s165 + $0x38] sm:$0xf]
      %v195 = vld [vmem:[%s165 + $0x3c] sm:$0xf]
      %v196 = vld [vmem:[%s165 + $0x40] sm:$0xf]
      %v197 = vld [vmem:[%s165 + $0x44] sm:$0xf]
      %v198 = vld [vmem:[%s165 + $0x48] sm:$0xf]
      %v199 = vld [vmem:[%s165 + $0x4c] sm:$0xf]
      %v200 = vld [vmem:[%s165 + $0x50] sm:$0xf]
      %v201 = vld [vmem:[%s165 + $0x54] sm:$0xf]
      %v202 = vld [vmem:[%s165 + $0x58] sm:$0xf]
      %v203 = vld [vmem:[%s165 + $0x5c] sm:$0xf]
      %v208 = vunpack.c.l.b16 %v172
      %v209 = vunpack.c.h.b16 %v172
      %v210 = vunpack.c.l.b16 %v173
      %v211 = vunpack.c.h.b16 %v173
      %v212 = vunpack.c.l.b16 %v174
      %v213 = vunpack.c.h.b16 %v174
      %v214 = vunpack.c.l.b16 %v175
      %v215 = vunpack.c.h.b16 %v175
      %v216 = vpack.c.b16 %v210, %v208
      %v217 = vpack.c.b16 %v211, %v209
      %v218 = vpack.c.b16 %v214, %v212
      %v219 = vpack.c.b16 %v215, %v213
      %v246 = vunpack.c.l.b16 %v180
      %v247 = vunpack.c.l.b16 %v181
      %v248 = vunpack.c.l.b16 %v182
      %v249 = vunpack.c.l.b16 %v183
      %v250 = vunpack.c.l.b16 %v184
      %v251 = vunpack.c.l.b16 %v185
      %v252 = vunpack.c.l.b16 %v186
      %v253 = vunpack.c.l.b16 %v187
      %v254 = vunpack.c.l.b16 %v188
      %v255 = vunpack.c.l.b16 %v189
      %v256 = vunpack.c.l.b16 %v190
      %v257 = vunpack.c.l.b16 %v191
      %v258 = vunpack.c.l.b16 %v192
      %v259 = vunpack.c.l.b16 %v193
      %v260 = vunpack.c.l.b16 %v194
      %v261 = vunpack.c.l.b16 %v195
      %v262 = vunpack.c.l.b16 %v196
      %v263 = vunpack.c.l.b16 %v197
      %v264 = vunpack.c.l.b16 %v198
      %v265 = vunpack.c.l.b16 %v199
      %v266 = vunpack.c.l.b16 %v200
      %v267 = vunpack.c.l.b16 %v201
      %v268 = vunpack.c.l.b16 %v202
      %v269 = vunpack.c.l.b16 %v203
      %v270 = vpack.c.b16 %v247, %v246
      %v271 = vpack.c.b16 %v249, %v248
      %v272 = vpack.c.b16 %v251, %v250
      %v273 = vpack.c.b16 %v253, %v252
      %v274 = vpack.c.b16 %v255, %v254
      %v275 = vpack.c.b16 %v257, %v256
      %v276 = vpack.c.b16 %v259, %v258
      %v277 = vpack.c.b16 %v261, %v260
      %v278 = vpack.c.b16 %v263, %v262
      %v279 = vpack.c.b16 %v265, %v264
      %v280 = vpack.c.b16 %v267, %v266
      %v281 = vpack.c.b16 %v269, %v268
      %vm294 = vcmask 523264
      %v296 = vsel %vm294, %v217, 0
      %v299 = vsel %vm294, %v219, 0
      %301 = vmatprep.subr.bf16.mxu0 0
      %302 = vmatpush1.bf16.msra.mxu0 %v270
      %303 = vmatprep.subr.bf16.mxu0 0
      %304 = vmatpush1.bf16.msra.mxu0 %v271
      %305 = vmatprep.subr.bf16.mxu0 0
      %306 = vmatpush1.bf16.msra.mxu0 %v272
      %307 = vmatprep.subr.bf16.mxu0 0
      %308 = vmatpush1.bf16.msra.mxu0 %v273
      %309 = vmatprep.subr.bf16.mxu0 0
      %310 = vmatpush1.bf16.msra.mxu0 %v274
      %311 = vmatprep.subr.bf16.mxu0 0
      %312 = vmatpush1.bf16.msra.mxu0 %v275
      %313 = vmatprep.subr.bf16.mxu0 0
      %314 = vmatpush1.bf16.msra.mxu0 %v276
      %315 = vmatprep.subr.bf16.mxu0 0
      %316 = vmatpush1.bf16.msra.mxu0 %v277
      %317 = vmatprep.subr.bf16.mxu0 0
      %318 = vmatpush1.bf16.msra.mxu0 %v278
      %319 = vmatprep.subr.bf16.mxu0 0
      %320 = vmatpush1.bf16.msra.mxu0 %v279
      %321 = vmatprep.subr.bf16.mxu0 0
      %322 = vmatpush1.bf16.msra.mxu0 %v280
      %323 = vmatprep.subr.bf16.mxu0 0
      %324 = vmatpush1.bf16.msra.mxu0 %v281
      %325 = vmatprep.subr.bf16.mxu0 0
      %326 = vmatpush1.bf16.msra.mxu0 0
      %327 = vmatprep.subr.bf16.mxu0 0
      %328 = vmatpush1.bf16.msra.mxu0 0
      %329 = vmatprep.subr.bf16.mxu0 0
      %330 = vmatpush1.bf16.msra.mxu0 0
      %331 = vmatprep.subr.bf16.mxu0 0
      %332 = vmatpush1.bf16.msra.mxu0 0
      %333 = vmatprep.mubr.bf16.mxu0 %v296
      %334 = vmatmul.mubr.bf16.gmra.mrb[0].mxu0 %v216
      %v335 = vpop.f32.mrb[0].mxu0
      %v336 = vadd.f32 0.0, %v335
      %v337 = vpop.f32.mrb[0].mxu0
      %v338 = vpop.f32.mrb[0].mxu0
      %v339 = vadd.f32 0.0, %v338
      %v340 = vpop.f32.mrb[0].mxu0
      %341 = vmatprep.mubr.bf16.mxu0 %v299
      %342 = vmatmul.mubr.bf16.gmra.mrb[0].mxu0 %v218
      %v343 = vpop.f32.mrb[0].mxu0
      %v344 = vadd.f32 0.0, %v343
      %v345 = vpop.f32.mrb[0].mxu0
      %v346 = vpop.f32.mrb[0].mxu0
      %v347 = vadd.f32 0.0, %v346
      %v348 = vpop.f32.mrb[0].mxu0
      %349 = vdwg.mxu0
      %v350 = vmul.f32 %v336, 0.007843138
      %v351 = vmul.f32 %v339, 0.007843138
      %v352 = vmul.f32 %v344, 0.007843138
      %v353 = vmul.f32 %v347, 0.007843138
      %355 = vset.pattern.permute.xlu0 0
      %356 = vperm.xlu0 %355, %v176
      %v357 = vpop.permute.xlu0 %356
      %360 = vset.pattern.permute.xlu0 0
      %361 = vperm.xlu0 %360, %v177
      %v362 = vpop.permute.xlu0 %361
      %365 = vset.pattern.permute.xlu0 0
      %366 = vperm.xlu0 %365, %v178
      %v367 = vpop.permute.xlu0 %366
      %370 = vset.pattern.permute.xlu0 0
      %371 = vperm.xlu0 %370, %v179
      %v372 = vpop.permute.xlu0 %371
      %v374 = vadd.f32 %v350, %v357
      %v375 = vadd.f32 %v351, %v362
      %v376 = vadd.f32 %v352, %v367
      %v377 = vadd.f32 %v353, %v372
      %vm378 = vcmask 31744
      %379 = vst.msk [vmem:[%s170] sm:$0xff] %vm378, %v374
      %380 = vst.msk [vmem:[%s170 + $0x8] sm:$0xff] %vm378, %v375
      %381 = vst.msk [vmem:[%s170 + $0x10] sm:$0xff] %vm378, %v376
      %382 = vst.msk [vmem:[%s170 + $0x18] sm:$0xff] %vm378, %v377
      %p383 = scmp.lt.s32.totalorder %s14, 1
      %s384 = scalar_select %p383, %s14, 1
      %s385 = smul.addr %s384, 4
      %s386 = smul.addr %s385, 8
      %s387 = scalar_lea.vmem %s3, %s386
      // Predicated region
      $region33: #{patch_encoder_forward.1} parent=31 // pred_check
        %p388 = pneg %p100
      $region34: #{patch_encoder_forward.1} parent=31 // pred_check_branch
        %390 = sbr.rel (%p388) target = $region36
      $region35: #{patch_encoder_forward.1} parent=31 // pred_region
        _
      $region36: #{patch_encoder_forward.1} parent=31 // pred_fallthru
        _
    $region32: #{patch_encoder_forward.1} parent=5 // pred_fallthru
      _
    %p391 = scmp.le.s32.totalorder 2, %s9
    // Predicated region
    $region37: #{patch_encoder_forward.1} parent=5 // pred_check
      %p392 = pneg %p391
    $region38: #{patch_encoder_forward.1} parent=5 // pred_check_branch
      %394 = sbr.rel (%p392) target = $region40
    $region39: #{patch_encoder_forward.1} parent=5 // pred_region
      %s395 = ssub.s32 %s9, 2
      // Predicated region
      $region41: #{patch_encoder_forward.1} parent=39 // pred_check
        %p396 = pneg %p106
      $region42: #{patch_encoder_forward.1} parent=39 // pred_check_branch
        %398 = sbr.rel (%p396) target = $region44
      $region43: #{patch_encoder_forward.1} parent=39 // pred_region
        %p399 = scmp.lt.s32.totalorder %s15, 1
        %s400 = scalar_select %p399, %s15, 1
        %s401 = smul.addr %s400, 4
        %s402 = smul.addr %s401, 8
        %s403 = scalar_lea.vmem %s3, %s402
      $region44: #{patch_encoder_forward.1} parent=39 // pred_fallthru
        _
    $region40: #{patch_encoder_forward.1} parent=5 // pred_fallthru
      _
  $region6: #{patch_encoder_forward.1} parent=0 // loop_footer
    %s13 = sadd.s32 1, %s9
  $region7: #{patch_encoder_forward.1} parent=0 // loop_footer_branch
    %8 = sbr.rel target = $region3
  $region8: #{patch_encoder_forward.1} parent=0 // loop_exit
    _

// kernel: patch_encoder_forward.1
$region0: #{patch_encoder_forward.1}
  #allocation0 [shape = 'u32[]', space=smem, size = 0x4, offset = 0x4, fixed_abs, tag = 'smem constant byte address 0x4 - core index']
  #allocation1 [shape = 'u32[144,128]{1,0:T(1,128)}', space=vmem, size = 0x12000, scoped, tag = 'internal scratch']
  %s0 = inlined_call_operand.vmem [shape: bf16[2,192,4], index: 0, kind: input, shape index: {}]
  %s1 = inlined_call_operand.vmem [shape: bf16[32,192], index: 1, kind: input, shape index: {}]
  %s2 = inlined_call_operand.vmem [shape: f32[32,1], index: 2, kind: input, shape index: {}]
  %s3 = inlined_call_operand.vmem [shape: f32[2,32,4], index: 3, kind: output, shape index: {}]
  %s4 = sld [smem:[#allocation0]]
  $region45: #{patch_encoder_forward.1} parent=0
    _
  %s6 = ssub.s32 1, %s4
  %s7 = scalar_select 0, %s6, %s4
  loop: start=0, step=1, limit=4
  $region2: #{patch_encoder_forward.1} parent=0 // loop_pre_header
    _
  $region3: #{patch_encoder_forward.1} parent=0 // loop_header
    %s9 = sphi 0, %s13
    %p10 = scmp.ge.s32.totalorder %s9, 4
    %s19 = sphi 0, %s21
    %s22 = sphi 0, %s19
    %s23 = sphi 0, %s22
    %s39 = sphi 0, %s23
    %s43 = sphi 0, %s43
    %s45 = sphi 0, %s43
    %s46 = sphi 0, %s45
    %s60 = sphi 0, %s46
    %s64 = sphi 0, %s64
    %s66 = sphi 0, %s64
    %s67 = sphi 0, %s66
    %s81 = sphi 0, %s67
    %s87 = sphi 0, %s89
    %s90 = sphi 0, %s87
    %s91 = sphi 0, %s90
    %s107 = sphi 0, %s91
  $region4: #{patch_encoder_forward.1} parent=0 // loop_header_branch
    %12 = sbr.rel (%p10) target = $region8
  $region5: #{patch_encoder_forward.1} parent=0 // loop_body
    %s14 = ssub.s32 %s9, 1
    %s15 = ssub.s32 %s9, 2
    %s16 = sadd.s32 %s9, 1
    %s17 = ssub.s32 %s9, %s16
    %p18 = scmp.eq.s32.totalorder %s17, 0
    %s20 = sadd.s32 %s19, 1
    %s21 = scalar_select %p18, %s19, %s20
    %p24 = pneg %p18
    %p25 = scmp.eq.s32.totalorder %s9, 1
    %p26 = por %p24, %p25
    %p27 = scmp.ne.s32.totalorder %s19, %s22
    %p28 = scmp.eq.s32.totalorder %s9, 0
    %p29 = por %p27, %p28
    %p30 = scmp.ne.s32.totalorder %s19, %s22
    %p31 = scmp.eq.s32.totalorder %s14, 1
    %p32 = por %p30, %p31
    %p33 = scmp.ne.s32.totalorder %s22, %s23
    %p34 = scmp.eq.s32.totalorder %s14, 0
    %p35 = por %p33, %p34
    %p36 = scmp.ne.s32.totalorder %s22, %s23
    %p37 = scmp.eq.s32.totalorder %s15, 1
    %p38 = por %p36, %p37
    %p40 = scmp.ne.s32.totalorder %s23, %s39
    %p41 = scmp.eq.s32.totalorder %s15, 0
    %p42 = por %p40, %p41
    %s44 = sadd.s32 %s43, 1
    %p47 = scmp.eq.s32.totalorder %s9, 1
    %p48 = scmp.ne.s32.totalorder %s43, %s45
    %p49 = scmp.eq.s32.totalorder %s9, 0
    %p50 = por %p48, %p49
    %p51 = scmp.ne.s32.totalorder %s43, %s45
    %p52 = scmp.eq.s32.totalorder %s14, 1
    %p53 = por %p51, %p52
    %p54 = scmp.ne.s32.totalorder %s45, %s46
    %p55 = scmp.eq.s32.totalorder %s14, 0
    %p56 = por %p54, %p55
    %p57 = scmp.ne.s32.totalorder %s45, %s46
    %p58 = scmp.eq.s32.totalorder %s15, 1
    %p59 = por %p57, %p58
    %p61 = scmp.ne.s32.totalorder %s46, %s60
    %p62 = scmp.eq.s32.totalorder %s15, 0
    %p63 = por %p61, %p62
    %s65 = sadd.s32 %s64, 1
    %p68 = scmp.eq.s32.totalorder %s9, 1
    %p69 = scmp.ne.s32.totalorder %s64, %s66
    %p70 = scmp.eq.s32.totalorder %s9, 0
    %p71 = por %p69, %p70
    %p72 = scmp.ne.s32.totalorder %s64, %s66
    %p73 = scmp.eq.s32.totalorder %s14, 1
    %p74 = por %p72, %p73
    %p75 = scmp.ne.s32.totalorder %s66, %s67
    %p76 = scmp.eq.s32.totalorder %s14, 0
    %p77 = por %p75, %p76
    %p78 = scmp.ne.s32.totalorder %s66, %s67
    %p79 = scmp.eq.s32.totalorder %s15, 1
    %p80 = por %p78, %p79
    %p82 = scmp.ne.s32.totalorder %s67, %s81
    %p83 = scmp.eq.s32.totalorder %s15, 0
    %p84 = por %p82, %p83
    %s85 = ssub.s32 %s9, %s16
    %p86 = scmp.eq.s32.totalorder %s85, 0
    %s88 = sadd.s32 %s87, 1
    %s89 = scalar_select %p86, %s87, %s88
    %p92 = pneg %p86
    %p93 = scmp.eq.s32.totalorder %s9, 1
    %p94 = por %p92, %p93
    %p95 = scmp.ne.s32.totalorder %s87, %s90
    %p96 = scmp.eq.s32.totalorder %s9, 0
    %p97 = por %p95, %p96
    %p98 = scmp.ne.s32.totalorder %s87, %s90
    %p99 = scmp.eq.s32.totalorder %s14, 1
    %p100 = por %p98, %p99
    %p101 = scmp.ne.s32.totalorder %s90, %s91
    %p102 = scmp.eq.s32.totalorder %s14, 0
    %p103 = por %p101, %p102
    %p104 = scmp.ne.s32.totalorder %s90, %s91
    %p105 = scmp.eq.s32.totalorder %s15, 1
    %p106 = por %p104, %p105
    %p108 = scmp.ne.s32.totalorder %s91, %s107
    %p109 = scmp.eq.s32.totalorder %s15, 0
    %p110 = por %p108, %p109
    %p111 = scmp.le.s32.totalorder 1, %s9
    %p112 = scmp.lt.s32.totalorder %s9, 3
    %p113 = pnand %p111, %p112
    %p114 = pneg %p113
    // Predicated region
    $region9: #{patch_encoder_forward.1} parent=5 // pred_check
      _
    $region10: #{patch_encoder_forward.1} parent=5 // pred_check_branch
      %116 = sbr.rel (%p113) target = $region12
    $region11: #{patch_encoder_forward.1} parent=5 // pred_region
      %s117 = ssub.s32 %s9, 1
      // Predicated region
      $region13: #{patch_encoder_forward.1} parent=11 // pred_check
        %p118 = pneg %p56
      $region14: #{patch_encoder_forward.1} parent=11 // pred_check_branch
        %120 = sbr.rel (%p118) target = $region16
      $region15: #{patch_encoder_forward.1} parent=11 // pred_region
        _
      $region16: #{patch_encoder_forward.1} parent=11 // pred_fallthru
        _
      // Predicated region
      $region17: #{patch_encoder_forward.1} parent=11 // pred_check
        %p121 = pneg %p77
      $region18: #{patch_encoder_forward.1} parent=11 // pred_check_branch
        %123 = sbr.rel (%p121) target = $region20
      $region19: #{patch_encoder_forward.1} parent=11 // pred_region
        _
      $region20: #{patch_encoder_forward.1} parent=11 // pred_fallthru
        _
    $region12: #{patch_encoder_forward.1} parent=5 // pred_fallthru
      _
    %p124 = scmp.lt.s32.totalorder %s9, 2
    // Predicated region
    $region21: #{patch_encoder_forward.1} parent=5 // pred_check
      %p125 = pneg %p124
    $region22: #{patch_encoder_forward.1} parent=5 // pred_check_branch
      %127 = sbr.rel (%p125) target = $region24
    $region23: #{patch_encoder_forward.1} parent=5 // pred_region
      // Predicated region
      $region25: #{patch_encoder_forward.1} parent=23 // pred_check
        %p128 = pneg %p29
      $region26: #{patch_encoder_forward.1} parent=23 // pred_check_branch
        %130 = sbr.rel (%p128) target = $region28
      $region27: #{patch_encoder_forward.1} parent=23 // pred_region
        %p131 = scmp.lt.s32.totalorder %s9, 1
        %s132 = scalar_select %p131, %s9, 1
        %s133 = smul.addr %s132, 24
        %s134 = smul.addr %s133, 4
        %s135 = scalar_lea.vmem %s0, %s134
      $region28: #{patch_encoder_forward.1} parent=23 // pred_fallthru
        _
    $region24: #{patch_encoder_forward.1} parent=5 // pred_fallthru
      _
    %p136 = scmp.le.s32.totalorder 1, %s9
    %p137 = scmp.lt.s32.totalorder %s9, 3
    %p138 = pnand %p136, %p137
    %p139 = pneg %p138
    // Predicated region
    $region29: #{patch_encoder_forward.1} parent=5 // pred_check
      _
    $region30: #{patch_encoder_forward.1} parent=5 // pred_check_branch
      %141 = sbr.rel (%p138) target = $region32
    $region31: #{patch_encoder_forward.1} parent=5 // pred_region
      %s142 = ssub.s32 %s9, 1
      %p143 = scmp.lt.s32.totalorder %s14, 1
      %s144 = scalar_select %p143, %s14, 1
      %s145 = smul.addr %s144, 24
      %s146 = smul.addr %s145, 4
      %s147 = scalar_lea.vmem %s0, %s146
      %p148 = pneg %p35
      %p149 = pneg %p32
      %p150 = pneg %p56
      %p151 = pneg %p53
      %p152 = pneg %p77
      %p153 = pneg %p74
      %p154 = pneg %p103
      %p155 = pneg %p100
      %p156 = scmp.lt.s32.totalorder %s14, 1
      %s157 = scalar_select %p156, %s14, 1
      %s158 = smul.addr %s157, 4
      %s159 = smul.addr %s158, 8
      %s160 = scalar_lea.vmem %s3, %s159
      %p161 = scmp.lt.s32.totalorder %s14, 1
      %s162 = scalar_select %p161, %s14, 1
      %s163 = smul.addr %s162, 24
      %s164 = smul.addr %s163, 4
      %s165 = scalar_lea.vmem %s0, %s164
      %p166 = scmp.lt.s32.totalorder %s14, 1
      %s167 = scalar_select %p166, %s14, 1
      %s168 = smul.addr %s167, 4
      %s169 = smul.addr %s168, 8
      %s170 = scalar_lea.vmem %s3, %s169
      %v172 = vld [vmem:[%s1] sm:$0xff]
      %v173 = vld [vmem:[%s1 + $0x8] sm:$0xff]
      %v174 = vld [vmem:[%s1 + $0x10] sm:$0xff]
      %v175 = vld [vmem:[%s1 + $0x18] sm:$0xff]
      %v176 = vld [vmem:[%s2] sm:$0xff]
      %v177 = vld [vmem:[%s2 + $0x8] sm:$0xff]
      %v178 = vld [vmem:[%s2 + $0x10] sm:$0xff]
      %v179 = vld [vmem:[%s2 + $0x18] sm:$0xff]
      %v180 = vld [vmem:[%s165] sm:$0xf]
      %v181 = vld [vmem:[%s165 + $0x4] sm:$0xf]
      %v182 = vld [vmem:[%s165 + $0x8] sm:$0xf]
      %v183 = vld [vmem:[%s165 + $0xc] sm:$0xf]
      %v184 = vld [vmem:[%s165 + $0x10] sm:$0xf]
      %v185 = vld [vmem:[%s165 + $0x14] sm:$0xf]
      %v186 = vld [vmem:[%s165 + $0x18] sm:$0xf]
      %v187 = vld [vmem:[%s165 + $0x1c] sm:$0xf]
      %v188 = vld [vmem:[%s165 + $0x20] sm:$0xf]
      %v189 = vld [vmem:[%s165 + $0x24] sm:$0xf]
      %v190 = vld [vmem:[%s165 + $0x28] sm:$0xf]
      %v191 = vld [vmem:[%s165 + $0x2c] sm:$0xf]
      %v192 = vld [vmem:[%s165 + $0x30] sm:$0xf]
      %v193 = vld [vmem:[%s165 + $0x34] sm:$0xf]
      %v194 = vld [vmem:[%s165 + $0x38] sm:$0xf]
      %v195 = vld [vmem:[%s165 + $0x3c] sm:$0xf]
      %v196 = vld [vmem:[%s165 + $0x40] sm:$0xf]
      %v197 = vld [vmem:[%s165 + $0x44] sm:$0xf]
      %v198 = vld [vmem:[%s165 + $0x48] sm:$0xf]
      %v199 = vld [vmem:[%s165 + $0x4c] sm:$0xf]
      %v200 = vld [vmem:[%s165 + $0x50] sm:$0xf]
      %v201 = vld [vmem:[%s165 + $0x54] sm:$0xf]
      %v202 = vld [vmem:[%s165 + $0x58] sm:$0xf]
      %v203 = vld [vmem:[%s165 + $0x5c] sm:$0xf]
      %v208 = vunpack.c.l.b16 %v172
      %v209 = vunpack.c.h.b16 %v172
      %v210 = vunpack.c.l.b16 %v173
      %v211 = vunpack.c.h.b16 %v173
      %v212 = vunpack.c.l.b16 %v174
      %v213 = vunpack.c.h.b16 %v174
      %v214 = vunpack.c.l.b16 %v175
      %v215 = vunpack.c.h.b16 %v175
      %v216 = vpack.c.b16 %v210, %v208
      %v217 = vpack.c.b16 %v211, %v209
      %v218 = vpack.c.b16 %v214, %v212
      %v219 = vpack.c.b16 %v215, %v213
      %v246 = vunpack.c.l.b16 %v180
      %v247 = vunpack.c.l.b16 %v181
      %v248 = vunpack.c.l.b16 %v182
      %v249 = vunpack.c.l.b16 %v183
      %v250 = vunpack.c.l.b16 %v184
      %v251 = vunpack.c.l.b16 %v185
      %v252 = vunpack.c.l.b16 %v186
      %v253 = vunpack.c.l.b16 %v187
      %v254 = vunpack.c.l.b16 %v188
      %v255 = vunpack.c.l.b16 %v189
      %v256 = vunpack.c.l.b16 %v190
      %v257 = vunpack.c.l.b16 %v191
      %v258 = vunpack.c.l.b16 %v192
      %v259 = vunpack.c.l.b16 %v193
      %v260 = vunpack.c.l.b16 %v194
      %v261 = vunpack.c.l.b16 %v195
      %v262 = vunpack.c.l.b16 %v196
      %v263 = vunpack.c.l.b16 %v197
      %v264 = vunpack.c.l.b16 %v198
      %v265 = vunpack.c.l.b16 %v199
      %v266 = vunpack.c.l.b16 %v200
      %v267 = vunpack.c.l.b16 %v201
      %v268 = vunpack.c.l.b16 %v202
      %v269 = vunpack.c.l.b16 %v203
      %v270 = vpack.c.b16 %v247, %v246
      %v271 = vpack.c.b16 %v249, %v248
      %v272 = vpack.c.b16 %v251, %v250
      %v273 = vpack.c.b16 %v253, %v252
      %v274 = vpack.c.b16 %v255, %v254
      %v275 = vpack.c.b16 %v257, %v256
      %v276 = vpack.c.b16 %v259, %v258
      %v277 = vpack.c.b16 %v261, %v260
      %v278 = vpack.c.b16 %v263, %v262
      %v279 = vpack.c.b16 %v265, %v264
      %v280 = vpack.c.b16 %v267, %v266
      %v281 = vpack.c.b16 %v269, %v268
      %vm294 = vcmask 523264
      %v296 = vsel %vm294, %v217, 0
      %v299 = vsel %vm294, %v219, 0
      %301 = vmatprep.subr.bf16.mxu0 0
      %302 = vmatpush1.bf16.msra.mxu0 %v270
      %303 = vmatprep.subr.bf16.mxu0 0
      %304 = vmatpush1.bf16.msra.mxu0 %v271
      %305 = vmatprep.subr.bf16.mxu0 0
      %306 = vmatpush1.bf16.msra.mxu0 %v272
      %307 = vmatprep.subr.bf16.mxu0 0
      %308 = vmatpush1.bf16.msra.mxu0 %v273
      %309 = vmatprep.subr.bf16.mxu0 0
      %310 = vmatpush1.bf16.msra.mxu0 %v274
      %311 = vmatprep.subr.bf16.mxu0 0
      %312 = vmatpush1.bf16.msra.mxu0 %v275
      %313 = vmatprep.subr.bf16.mxu0 0
      %314 = vmatpush1.bf16.msra.mxu0 %v276
      %315 = vmatprep.subr.bf16.mxu0 0
      %316 = vmatpush1.bf16.msra.mxu0 %v277
      %317 = vmatprep.subr.bf16.mxu0 0
      %318 = vmatpush1.bf16.msra.mxu0 %v278
      %319 = vmatprep.subr.bf16.mxu0 0
      %320 = vmatpush1.bf16.msra.mxu0 %v279
      %321 = vmatprep.subr.bf16.mxu0 0
      %322 = vmatpush1.bf16.msra.mxu0 %v280
      %323 = vmatprep.subr.bf16.mxu0 0
      %324 = vmatpush1.bf16.msra.mxu0 %v281
      %325 = vmatprep.subr.bf16.mxu0 0
      %326 = vmatpush1.bf16.msra.mxu0 0
      %327 = vmatprep.subr.bf16.mxu0 0
      %328 = vmatpush1.bf16.msra.mxu0 0
      %329 = vmatprep.subr.bf16.mxu0 0
      %330 = vmatpush1.bf16.msra.mxu0 0
      %331 = vmatprep.subr.bf16.mxu0 0
      %332 = vmatpush1.bf16.msra.mxu0 0
      %333 = vmatprep.mubr.bf16.mxu0 %v296
      %334 = vmatmul.mubr.bf16.gmra.mrb[0].mxu0 %v216
      %v335 = vpop.f32.mrb[0].mxu0
      %v336 = vadd.f32 0.0, %v335
      %v337 = vpop.f32.mrb[0].mxu0
      %v338 = vpop.f32.mrb[0].mxu0
      %v339 = vadd.f32 0.0, %v338
      %v340 = vpop.f32.mrb[0].mxu0
      %341 = vmatprep.mubr.bf16.mxu0 %v299
      %342 = vmatmul.mubr.bf16.gmra.mrb[0].mxu0 %v218
      %v343 = vpop.f32.mrb[0].mxu0
      %v344 = vadd.f32 0.0, %v343
      %v345 = vpop.f32.mrb[0].mxu0
      %v346 = vpop.f32.mrb[0].mxu0
      %v347 = vadd.f32 0.0, %v346
      %v348 = vpop.f32.mrb[0].mxu0
      %349 = vdwg.mxu0
      %v350 = vmul.f32 %v336, 0.007843138
      %v351 = vmul.f32 %v339, 0.007843138
      %v352 = vmul.f32 %v344, 0.007843138
      %v353 = vmul.f32 %v347, 0.007843138
      %355 = vset.pattern.permute.xlu0 0
      %356 = vperm.xlu0 %355, %v176
      %v357 = vpop.permute.xlu0 %356
      %360 = vset.pattern.permute.xlu0 0
      %361 = vperm.xlu0 %360, %v177
      %v362 = vpop.permute.xlu0 %361
      %365 = vset.pattern.permute.xlu0 0
      %366 = vperm.xlu0 %365, %v178
      %v367 = vpop.permute.xlu0 %366
      %370 = vset.pattern.permute.xlu0 0
      %371 = vperm.xlu0 %370, %v179
      %v372 = vpop.permute.xlu0 %371
      %v374 = vadd.f32 %v350, %v357
      %v375 = vadd.f32 %v351, %v362
      %v376 = vadd.f32 %v352, %v367
      %v377 = vadd.f32 %v353, %v372
      %vm378 = vcmask 31744
      %379 = vst.msk [vmem:[%s170] sm:$0xff] %vm378, %v374
      %380 = vst.msk [vmem:[%s170 + $0x8] sm:$0xff] %vm378, %v375
      %381 = vst.msk [vmem:[%s170 + $0x10] sm:$0xff] %vm378, %v376
      %382 = vst.msk [vmem:[%s170 + $0x18] sm:$0xff] %vm378, %v377
      %p383 = scmp.lt.s32.totalorder %s14, 1
      %s384 = scalar_select %p383, %s14, 1
      %s385 = smul.addr %s384, 4
      %s386 = smul.addr %s385, 8
      %s387 = scalar_lea.vmem %s3, %s386
      // Predicated region
      $region33: #{patch_encoder_forward.1} parent=31 // pred_check
        %p388 = pneg %p100
      $region34: #{patch_encoder_forward.1} parent=31 // pred_check_branch
        %390 = sbr.rel (%p388) target = $region36
      $region35: #{patch_encoder_forward.1} parent=31 // pred_region
        _
      $region36: #{patch_encoder_forward.1} parent=31 // pred_fallthru
        _
    $region32: #{patch_encoder_forward.1} parent=5 // pred_fallthru
      _
    %p391 = scmp.le.s32.totalorder 2, %s9
    // Predicated region
    $region37: #{patch_encoder_forward.1} parent=5 // pred_check
      %p392 = pneg %p391
    $region38: #{patch_encoder_forward.1} parent=5 // pred_check_branch
      %394 = sbr.rel (%p392) target = $region40
    $region39: #{patch_encoder_forward.1} parent=5 // pred_region
      %s395 = ssub.s32 %s9, 2
      // Predicated region
      $region41: #{patch_encoder_forward.1} parent=39 // pred_check
        %p396 = pneg %p106
      $region42: #{patch_encoder_forward.1} parent=39 // pred_check_branch
        %398 = sbr.rel (%p396) target = $region44
      $region43: #{patch_encoder_forward.1} parent=39 // pred_region
        %p399 = scmp.lt.s32.totalorder %s15, 1
        %s400 = scalar_select %p399, %s15, 1
        %s401 = smul.addr %s400, 4
        %s402 = smul.addr %s401, 8
        %s403 = scalar_lea.vmem %s3, %s402
      $region44: #{patch_encoder_forward.1} parent=39 // pred_fallthru
        _
    $region40: #{patch_encoder_forward.1} parent=5 // pred_fallthru
      _
  $region6: #{patch_encoder_forward.1} parent=0 // loop_footer
    %s13 = sadd.s32 1, %s9
  $region7: #{patch_encoder_forward.1} parent=0 // loop_footer_branch
    %8 = sbr.rel target = $region3
  $region8: #{patch_encoder_forward.1} parent=0 // loop_exit
    _

</llo_original>
